<compile_context>
chip_gen: v5e
topology: v5e:2x2
jax: 0.10.0
libtpu: 0.0.40
codegen_flags: <defaults>
</compile_context>

<pallas_src>
import jax
import jax.numpy as jnp
from jax import lax
from jax.experimental import pallas as pl
from jax.experimental.pallas import tpu as pltpu


def _round_up(a, m):
    return -(-a // m) * m


def _vmem_cap_bytes():
    """75% of physical per-core VMEM (48 MiB on v7x, 96 MiB on v5e/v6e)."""
    phys = 64 * 2**20
    try:
        info = pltpu.get_tpu_info()
        phys = int(getattr(info, "vmem_capacity_bytes", phys))
    except Exception:
        pass
    phys = max(phys, 32 * 2**20)
    return (phys * 3) // 4


def _conv3_sigmoid(w_ref, pad_ref, length):
    """sigmoid(3-tap 'same' conv over the lane dim).

    pad_ref: (B, 2, W) f32 zero-filled scratch holding the [avg; max] stats at lane
    offset 128, so columns 127 and 128+length are guaranteed zero (the conv padding).
    Returns (B, 1, length) f32.
    """
    left = pad_ref[:, :, 127:127 + length]      # s[l-1]
    mid = pad_ref[:, :, 128:128 + length]       # s[l]
    right = pad_ref[:, :, 129:129 + length]     # s[l+1]
    w00 = w_ref[0, 0]; w01 = w_ref[0, 1]; w02 = w_ref[0, 2]
    w10 = w_ref[1, 0]; w11 = w_ref[1, 1]; w12 = w_ref[1, 2]
    conv = (w00 * left[:, 0:1] + w01 * mid[:, 0:1] + w02 * right[:, 0:1]
            + w10 * left[:, 1:2] + w11 * mid[:, 1:2] + w12 * right[:, 1:2])
    return jax.nn.sigmoid(conv)


def _fused_kernel(w_ref, x_ref, o_ref, pad_ref):
    # w_ref:   SMEM (2, 3) f32        conv1 weight (out-channel squeezed)
    # x_ref:   VMEM (NB, C, L)        input block (NB whole batch rows), native dtype
    # o_ref:   VMEM (NB, C, L)        output block
    # pad_ref: VMEM (NB, 2, W) f32    stats + conv-padding scratch, W >= L + 129
    length = x_ref.shape[2]
    x = x_ref[...]
    pad_ref[...] = jnp.zeros_like(pad_ref)
    # f32 accumulation for the mean; max stays in native dtype until the cast.
    pad_ref[:, 0:1, 128:128 + length] = jnp.mean(
        x, axis=1, keepdims=True, dtype=jnp.float32)
    pad_ref[:, 1:2, 128:128 + length] = jnp.max(
        x, axis=1, keepdims=True).astype(jnp.float32)
    att = _conv3_sigmoid(w_ref, pad_ref, length)           # (NB, 1, L) f32
    # Multiply in the native dtype (no f32 materialization of the (NB, C, L) block).
    o_ref[...] = att.astype(x.dtype) * x


def _reduce_kernel(x_ref, stats_ref):
    # x_ref: (1, C, TL) native dtype; stats_ref: (1, 2, TL) f32 (row0 mean, row1 max).
    x = x_ref[0]
    stats_ref[0, 0:1, :] = jnp.mean(x, axis=0, keepdims=True, dtype=jnp.float32)
    stats_ref[0, 1:2, :] = jnp.max(x, axis=0, keepdims=True).astype(jnp.float32)


def _apply_kernel(w_ref, sp_ref, x_ref, o_ref, pad_ref, att_ref):
    # w_ref:   SMEM (2, 3) f32         conv1 weight
    # sp_ref:  VMEM (1, 2, L) f32      full stats row of the current batch (resident)
    # x_ref:   VMEM (1, C, TL)         input tile
    # o_ref:   VMEM (1, C, TL)         output tile
    # pad_ref: VMEM (1, 2, W) f32      conv-padding scratch, W >= L + 129
    # att_ref: VMEM (1, 1, n_l*TL) f32 attention row, computed once per batch (t == 0)
    t = pl.program_id(1)
    tl = x_ref.shape[2]
    length = sp_ref.shape[2]

    @pl.when(t == 0)
    def _():
        pad_ref[...] = jnp.zeros_like(pad_ref)
        att_ref[...] = jnp.zeros_like(att_ref)          # also zeroes the ragged tail
        pad_ref[:, :, 128:128 + length] = sp_ref[...]   # lane-aligned store at 128
        att_ref[:, :, 0:length] = _conv3_sigmoid(w_ref, pad_ref, length)

    if att_ref.shape[2] == tl:                  # single L-tile per batch
        att = att_ref[...]
    else:                                       # tiled path: tl is a multiple of 128
        att = att_ref[:, :, pl.ds(pl.multiple_of(t * tl, 128), tl)]
    x = x_ref[...]
    o_ref[...] = att.astype(x.dtype) * x


def spatial_layer(x, w, *, block_bytes=None):
    """Spatial attention: sigmoid(Conv1d_k3([mean_c(x); max_c(x)])) * x.

    x: (N, C, L); w: Conv1d(2, 1, 3, bias=False) weight, shape (2, 3) or (1, 2, 3).
    """
    if x.ndim != 3:
        raise ValueError("x must be (N, C, L)")
    w = jnp.asarray(w, jnp.float32)
    if w.shape == (1, 2, 3):
        w = w[0]
    if w.shape != (2, 3):
        raise ValueError("w must have shape (2, 3) or (1, 2, 3)")

    N, C, L = x.shape
    itemsize = jnp.dtype(x.dtype).itemsize
    row_bytes = C * L * itemsize

    vmem_cap = _vmem_cap_bytes()
    if block_bytes is None:
        # Per-x-buffer target: multi-MiB DMAs; 4 live buffers + scratch stay << vmem_cap.
        block_bytes = max(1 << 20, vmem_cap // 8)
    block_bytes = int(block_bytes)

    lane_pad = 128 + _round_up(L + 1, 128)   # scratch lane width (stats live at offset 128)

    if row_bytes <= block_bytes:
        # ---------------- fused single-pass path (common case) ----------------
        nb = int(max(1, min(N, block_bytes // max(row_bytes, 1))))
        grid = (pl.cdiv(N, nb),)
        est = (4 * nb * row_bytes            # x in + out, double buffered
               + nb * 2 * lane_pad * 4       # stats/conv scratch
               + (1 << 20))                  # headroom
        vmem_limit = int(min(vmem_cap, max(32 * 2**20, 2 * est)))
        # (If the caller does not need x afterwards, input_output_aliases={1: 0} would
        #  avoid a second N*C*L HBM allocation; not enabled here to keep semantics plain.)
        return pl.pallas_call(
            _fused_kernel,
            out_shape=jax.ShapeDtypeStruct((N, C, L), x.dtype),
            grid_spec=pltpu.PrefetchScalarGridSpec(
                num_scalar_prefetch=0,
                grid=grid,
                in_specs=[
                    pl.BlockSpec(memory_space=pltpu.MemorySpace.SMEM),   # conv weight
                    pl.BlockSpec((nb, C, L), lambda i: (i, 0, 0)),       # x block
                ],
                out_specs=pl.BlockSpec((nb, C, L), lambda i: (i, 0, 0)),
                scratch_shapes=[pltpu.VMEM((nb, 2, lane_pad), jnp.float32)],
            ),
            compiler_params=pltpu.CompilerParams(
                dimension_semantics=("parallel",),
                vmem_limit_bytes=vmem_limit),
        )(w, x)

    # ------------- two-pass fallback (a single row exceeds the block budget) -------------
    tl = max(128, (block_bytes // (C * itemsize)) // 128 * 128)
    if tl >= L:
        tl = L
    n_l = -(-L // tl)

    est1 = 4 * C * tl * itemsize + 4 * 2 * tl * 4 + (1 << 20)
    vmem_limit1 = int(min(vmem_cap, max(32 * 2**20, 2 * est1)))
    stats = pl.pallas_call(
        _reduce_kernel,
        out_shape=jax.ShapeDtypeStruct((N, 2, L), jnp.float32),
        grid_spec=pltpu.PrefetchScalarGridSpec(
            num_scalar_prefetch=0,
            grid=(N, n_l),
            in_specs=[pl.BlockSpec((1, C, tl), lambda b, t: (b, 0, t))],
            out_specs=pl.BlockSpec((1, 2, tl), lambda b, t: (b, 0, t)),
        ),
        compiler_params=pltpu.CompilerParams(
            dimension_semantics=("parallel", "parallel"),
            vmem_limit_bytes=vmem_limit1),
    )(x)

    est2 = (4 * C * tl * itemsize            # x in + out, double buffered
            + 2 * 2 * L * 4                  # stats row (per batch, double buffered)
            + 2 * lane_pad * 4               # conv-padding scratch
            + n_l * tl * 4                   # attention row scratch
            + (1 << 20))
    vmem_limit2 = int(min(vmem_cap, max(32 * 2**20, 2 * est2)))
    return pl.pallas_call(
        _apply_kernel,
        out_shape=jax.ShapeDtypeStruct((N, C, L), x.dtype),
        grid_spec=pltpu.PrefetchScalarGridSpec(
            num_scalar_prefetch=0,
            grid=(N, n_l),
            in_specs=[
                pl.BlockSpec(memory_space=pltpu.MemorySpace.SMEM),       # conv weight
                pl.BlockSpec((1, 2, L), lambda b, t: (b, 0, 0)),         # stats row
                pl.BlockSpec((1, C, tl), lambda b, t: (b, 0, t)),        # x tile
            ],
            out_specs=pl.BlockSpec((1, C, tl), lambda b, t: (b, 0, t)),
            scratch_shapes=[pltpu.VMEM((1, 2, lane_pad), jnp.float32),
                            pltpu.VMEM((1, 1, n_l * tl), jnp.float32)],
        ),
        compiler_params=pltpu.CompilerParams(
            dimension_semantics=("parallel", "arbitrary"),
            vmem_limit_bytes=vmem_limit2),
    )(w, stats, x)


def spatial_layer_ref(x, w):
    """Pure-JAX reference for validation."""
    avg = jnp.mean(x, axis=1, keepdims=True)
    mx = jnp.max(x, axis=1, keepdims=True)
    cat = jnp.concatenate([avg, mx], axis=1)                 # (N, 2, L)
    wk = jnp.asarray(w, cat.dtype)
    if wk.shape == (2, 3):
        wk = wk[None]                                        # (O=1, I=2, K=3)
    conv = lax.conv_general_dilated(
        cat, wk, window_strides=(1,), padding=((1, 1),),
        dimension_numbers=("NCH", "OIH", "NCH"))
    return jax.nn.sigmoid(conv) * x


if __name__ == "__main__":
    key = jax.random.PRNGKey(0)
    kw, k1, k2, k3 = jax.random.split(key, 4)

    # Deterministic Conv1d(2, 1, 3, bias=False) weight (PyTorch (1, 2, 3), out dim squeezed).
    fan_in = 2 * 3
    bound = 1.0 / (fan_in ** 0.5)
    w = jax.random.uniform(kw, (2, 3), minval=-bound, maxval=bound, dtype=jnp.float32)

    def check(x, **kwargs):
        out = spatial_layer(x, w, **kwargs)
        jax.block_until_ready(out)
        ref = spatial_layer_ref(x, w)
        assert out.shape == ref.shape and out.dtype == ref.dtype
        assert jnp.allclose(out, ref, atol=1e-5, rtol=1e-5), (
            float(jnp.max(jnp.abs(out - ref))))

    # Small shape matching the module interface (fused path, all rows in one block).
    check(jax.random.normal(k1, (2, 4, 16), dtype=jnp.float32))
    # Fused path with multi-row blocks and a partial last batch block (N=3, NB=2),
    # non-128-multiple L and odd channel count.
    check(jax.random.normal(k2, (3, 5, 200), dtype=jnp.float32), block_bytes=8192)
    # Two-pass fallback: several 128-lane L tiles plus a ragged tail.
    check(jax.random.normal(k3, (2, 8, 300), dtype=jnp.float32), block_bytes=4096)

    print("KERNEL_OK")
</pallas_src>

<mosaic_0001>
module attributes {stable_mosaic.version = 11 : i64} {
  func.func @_fused_kernel(%arg0: i32, %arg1: memref<2x3xf32, #tpu.memory_space<smem>>, %arg2: memref<2x4x16xf32, #tpu.memory_space<vmem>>, %arg3: memref<2x4x16xf32, #tpu.memory_space<vmem>>, %arg4: memref<2x2x256xf32, #tpu.memory_space<vmem>>) attributes {dimension_semantics = [#tpu.dimension_semantics<parallel>], iteration_bounds = array<i64: 1>, scalar_prefetch = 0 : i64, scratch_operands = 1 : i64, tpu.core_type = #tpu.core_type<tc>, window_params = [{transform_indices = @transform_0, window_bounds = array<i64: 2, 3>}, {transform_indices = @transform_1, window_bounds = array<i64: 2, 4, 16>}, {transform_indices = @transform_2, window_bounds = array<i64: 2, 4, 16>}]} {
    %c0 = arith.constant 0 : index
    %c0_0 = arith.constant 0 : index
    %c0_1 = arith.constant 0 : index
    %0 = vector.load %arg2[%c0, %c0_0, %c0_1] : memref<2x4x16xf32, #tpu.memory_space<vmem>>, vector<2x4x16xf32>
    %cst = arith.constant 0.000000e+00 : f32
    %1 = vector.broadcast %cst : f32 to vector<2x2x256xf32>
    %c0_2 = arith.constant 0 : index
    %c0_3 = arith.constant 0 : index
    %c0_4 = arith.constant 0 : index
    %2 = vector.load %arg4[%c0_2, %c0_3, %c0_4] : memref<2x2x256xf32, #tpu.memory_space<vmem>>, vector<2x2x256xf32>
    tpu.vector_store %arg4[%c0_2, %c0_3, %c0_4], %1 {strides = array<i32>} : memref<2x2x256xf32, #tpu.memory_space<vmem>>, vector<2x2x256xf32>,
    %cst_5 = arith.constant dense<0.000000e+00> : vector<2x16xf32>
    %3 = vector.multi_reduction <add>, %0, %cst_5 [1] : vector<2x4x16xf32> to vector<2x16xf32>
    %4 = vector.shape_cast %3 : vector<2x16xf32> to vector<2x1x16xf32>
    %cst_6 = arith.constant 4.000000e+00 : f32
    %5 = vector.broadcast %cst_6 : f32 to vector<2x1x16xf32>
    %6 = arith.divf %4, %5 : vector<2x1x16xf32>
    %c0_7 = arith.constant 0 : index
    %c0_8 = arith.constant 0 : index
    %c128 = arith.constant 128 : index
    %7 = vector.load %arg4[%c0_7, %c0_8, %c128] : memref<2x2x256xf32, #tpu.memory_space<vmem>>, vector<2x1x16xf32>
    tpu.vector_store %arg4[%c0_7, %c0_8, %c128], %6 {strides = array<i32>} : memref<2x2x256xf32, #tpu.memory_space<vmem>>, vector<2x1x16xf32>,
    %cst_9 = arith.constant dense<0xFF800000> : vector<2x16xf32>
    %8 = vector.multi_reduction <maximumf>, %0, %cst_9 [1] : vector<2x4x16xf32> to vector<2x16xf32>
    %9 = vector.shape_cast %8 : vector<2x16xf32> to vector<2x1x16xf32>
    %c0_10 = arith.constant 0 : index
    %c1 = arith.constant 1 : index
    %c128_11 = arith.constant 128 : index
    %10 = vector.load %arg4[%c0_10, %c1, %c128_11] : memref<2x2x256xf32, #tpu.memory_space<vmem>>, vector<2x1x16xf32>
    tpu.vector_store %arg4[%c0_10, %c1, %c128_11], %9 {strides = array<i32>} : memref<2x2x256xf32, #tpu.memory_space<vmem>>, vector<2x1x16xf32>,
    %c0_12 = arith.constant 0 : index
    %c0_13 = arith.constant 0 : index
    %c127 = arith.constant 127 : index
    %11 = vector.load %arg4[%c0_12, %c0_13, %c127] : memref<2x2x256xf32, #tpu.memory_space<vmem>>, vector<2x2x16xf32>
    %c0_14 = arith.constant 0 : index
    %c0_15 = arith.constant 0 : index
    %c128_16 = arith.constant 128 : index
    %12 = vector.load %arg4[%c0_14, %c0_15, %c128_16] : memref<2x2x256xf32, #tpu.memory_space<vmem>>, vector<2x2x16xf32>
    %c0_17 = arith.constant 0 : index
    %c0_18 = arith.constant 0 : index
    %c129 = arith.constant 129 : index
    %13 = vector.load %arg4[%c0_17, %c0_18, %c129] : memref<2x2x256xf32, #tpu.memory_space<vmem>>, vector<2x2x16xf32>
    %c0_19 = arith.constant 0 : index
    %c0_20 = arith.constant 0 : index
    %14 = memref.load %arg1[%c0_19, %c0_20] : memref<2x3xf32, #tpu.memory_space<smem>>
    %c0_21 = arith.constant 0 : index
    %c1_22 = arith.constant 1 : index
    %15 = memref.load %arg1[%c0_21, %c1_22] : memref<2x3xf32, #tpu.memory_space<smem>>
    %c0_23 = arith.constant 0 : index
    %c2 = arith.constant 2 : index
    %16 = memref.load %arg1[%c0_23, %c2] : memref<2x3xf32, #tpu.memory_space<smem>>
    %c1_24 = arith.constant 1 : index
    %c0_25 = arith.constant 0 : index
    %17 = memref.load %arg1[%c1_24, %c0_25] : memref<2x3xf32, #tpu.memory_space<smem>>
    %c1_26 = arith.constant 1 : index
    %c1_27 = arith.constant 1 : index
    %18 = memref.load %arg1[%c1_26, %c1_27] : memref<2x3xf32, #tpu.memory_space<smem>>
    %c1_28 = arith.constant 1 : index
    %c2_29 = arith.constant 2 : index
    %19 = memref.load %arg1[%c1_28, %c2_29] : memref<2x3xf32, #tpu.memory_space<smem>>
    %20 = vector.extract_strided_slice %11 {offsets = [0, 0, 0], sizes = [2, 1, 16], strides = [1, 1, 1]} : vector<2x2x16xf32> to vector<2x1x16xf32>
    %21 = vector.broadcast %14 : f32 to vector<2x1x16xf32>
    %22 = arith.mulf %21, %20 : vector<2x1x16xf32>
    %23 = vector.extract_strided_slice %12 {offsets = [0, 0, 0], sizes = [2, 1, 16], strides = [1, 1, 1]} : vector<2x2x16xf32> to vector<2x1x16xf32>
    %24 = vector.broadcast %15 : f32 to vector<2x1x16xf32>
    %25 = arith.mulf %24, %23 : vector<2x1x16xf32>
    %26 = arith.addf %22, %25 : vector<2x1x16xf32>
    %27 = vector.extract_strided_slice %13 {offsets = [0, 0, 0], sizes = [2, 1, 16], strides = [1, 1, 1]} : vector<2x2x16xf32> to vector<2x1x16xf32>
    %28 = vector.broadcast %16 : f32 to vector<2x1x16xf32>
    %29 = arith.mulf %28, %27 : vector<2x1x16xf32>
    %30 = arith.addf %26, %29 : vector<2x1x16xf32>
    %31 = vector.extract_strided_slice %11 {offsets = [0, 1, 0], sizes = [2, 1, 16], strides = [1, 1, 1]} : vector<2x2x16xf32> to vector<2x1x16xf32>
    %32 = vector.broadcast %17 : f32 to vector<2x1x16xf32>
    %33 = arith.mulf %32, %31 : vector<2x1x16xf32>
    %34 = arith.addf %30, %33 : vector<2x1x16xf32>
    %35 = vector.extract_strided_slice %12 {offsets = [0, 1, 0], sizes = [2, 1, 16], strides = [1, 1, 1]} : vector<2x2x16xf32> to vector<2x1x16xf32>
    %36 = vector.broadcast %18 : f32 to vector<2x1x16xf32>
    %37 = arith.mulf %36, %35 : vector<2x1x16xf32>
    %38 = arith.addf %34, %37 : vector<2x1x16xf32>
    %39 = vector.extract_strided_slice %13 {offsets = [0, 1, 0], sizes = [2, 1, 16], strides = [1, 1, 1]} : vector<2x2x16xf32> to vector<2x1x16xf32>
    %40 = vector.broadcast %19 : f32 to vector<2x1x16xf32>
    %41 = arith.mulf %40, %39 : vector<2x1x16xf32>
    %42 = arith.addf %38, %41 : vector<2x1x16xf32>
    %43 = arith.negf %42 : vector<2x1x16xf32>
    %44 = math.exp %43 : vector<2x1x16xf32>
    %cst_30 = arith.constant 1.000000e+00 : f32
    %45 = vector.broadcast %cst_30 : f32 to vector<2x1x16xf32>
    %46 = arith.addf %45, %44 : vector<2x1x16xf32>
    %47 = arith.divf %45, %46 : vector<2x1x16xf32>
    %48 = vector.broadcast %47 : vector<2x1x16xf32> to vector<2x4x16xf32>
    %49 = arith.mulf %48, %0 : vector<2x4x16xf32>
    %c0_31 = arith.constant 0 : index
    %c0_32 = arith.constant 0 : index
    %c0_33 = arith.constant 0 : index
    %50 = vector.load %arg3[%c0_31, %c0_32, %c0_33] : memref<2x4x16xf32, #tpu.memory_space<vmem>>, vector<2x4x16xf32>
    tpu.vector_store %arg3[%c0_31, %c0_32, %c0_33], %49 {strides = array<i32>} : memref<2x4x16xf32, #tpu.memory_space<vmem>>, vector<2x4x16xf32>,
    return
  }
  func.func @transform_0(%arg0: i32) -> (i32, i32) {
    %c0_i32 = arith.constant 0 : i32
    %c0_i32_0 = arith.constant 0 : i32
    %c0_i32_1 = arith.constant 0 : i32
    return %c0_i32, %c0_i32_0 : i32, i32
  }
  func.func @transform_1(%arg0: i32) -> (i32, i32, i32) {
    %c0_i32 = arith.constant 0 : i32
    %c0_i32_0 = arith.constant 0 : i32
    %c0_i32_1 = arith.constant 0 : i32
    return %arg0, %c0_i32, %c0_i32_0 : i32, i32, i32
  }
  func.func @transform_2(%arg0: i32) -> (i32, i32, i32) {
    %c0_i32 = arith.constant 0 : i32
    %c0_i32_0 = arith.constant 0 : i32
    %c0_i32_1 = arith.constant 0 : i32
    return %arg0, %c0_i32, %c0_i32_0 : i32, i32, i32
  }
}

</mosaic_0001>

<llo_original>
// kernel: tpu_custom_call.1
$region0: #{tpu_custom_call.1}
  #allocation0 [shape = 'u32[]', space=smem, size = 0x4, offset = 0x4, fixed_abs, tag = 'smem constant byte address 0x4 - core index']
  #allocation1 [shape = 'u32[72,128]{1,0:T(1,128)}', space=vmem, size = 0x9000, scoped, tag = 'internal scratch']
  #allocation2 [shape = 'f32[2,2,256]{2,1,0:T(2,128)}', space=vmem, size = 0x1000, scoped, tag = 'scratch operand']
  %s0 = inlined_call_operand.hbm [shape: f32[2,3], index: 0, kind: input, shape index: {}]
  %s1 = inlined_call_operand.hbm [shape: f32[2,4,16], index: 1, kind: input, shape index: {}]
  %s2 = inlined_call_operand.hbm [shape: f32[2,4,16], index: 2, kind: output, shape index: {}]
  %s3 = sld [smem:[#allocation0]]
  $region26: #{tpu_custom_call.1} parent=0
    _
  %s5 = ssub.s32 1, %s3
  %s6 = scalar_select 0, %s5, %s3
  $region1: #{tpu_custom_call.1} parent=0
    #allocation3 [shape = 'u8[1024]{0}', space=smem, size = 0x400, scoped, tag = 'input window, operand 0, single buffered']
    #allocation4 [shape = 's32[1]{0}', space=sflag, size = 0x4, scoped, tag = 'scoped memory for tpu_custom_call.1']
    #allocation5 [shape = 's32[1]{0}', space=sflag, size = 0x4, scoped, tag = 'scoped memory for tpu_custom_call.1']
    #allocation6 [shape = 's32[1]{0}', space=sflag, size = 0x4, scoped, tag = 'scoped memory for tpu_custom_call.1']
    #allocation7 [shape = 'u8[4096]{0}', space=vmem, size = 0x1000, scoped, tag = 'input window, operand 1, single buffered']
    #allocation8 [shape = 'u8[4096]{0}', space=vmem, size = 0x1000, scoped, tag = 'output window, operand 0, single buffered']
    %7 = vsyncpa [#allocation6], 0
    %8 = vsyncpa [#allocation4], 0
    %9 = vsyncpa [#allocation5], 0
    // Predicated region
    $region2: #{tpu_custom_call.1} parent=1 // pred_check
      _
    $region3: #{tpu_custom_call.1} parent=1 // pred_check_branch
      %11 = sbr.rel (0) target = $region5
    $region4: #{tpu_custom_call.1} parent=1 // pred_region
      %13 = vsyncadd [#allocation6], 0
      %s15 = sshll.u32 %s0, 4
      %s16 = int_to_ptr.hbm [resolvable:$true] %s15
      %18 = dma.hbm_to_smem %s16, 32, [#allocation3], [#allocation6]
    $region5: #{tpu_custom_call.1} parent=1 // pred_fallthru
      _
    // Predicated region
    $region6: #{tpu_custom_call.1} parent=1 // pred_check
      _
    $region7: #{tpu_custom_call.1} parent=1 // pred_check_branch
      %20 = sbr.rel (0) target = $region9
    $region8: #{tpu_custom_call.1} parent=1 // pred_region
      %22 = vsyncadd [#allocation4], 0
      %s23 = sshll.u32 %s1, 4
      %s24 = int_to_ptr.hbm [resolvable:$true] %s23
      %s25 = sshll.u32 [#allocation7], 4
      %s26 = int_to_ptr.vmem [resolvable:$true] %s25
      %31 = dma.hbm_to_vmem [thread:$0]  %s24, 128, %s26, [#allocation4], 64, 64, 4
    $region9: #{tpu_custom_call.1} parent=1 // pred_fallthru
      _
    // Predicated region
    $region10: #{tpu_custom_call.1} parent=1 // pred_check
      _
    $region11: #{tpu_custom_call.1} parent=1 // pred_check_branch
      %33 = sbr.rel (0) target = $region13
    $region12: #{tpu_custom_call.1} parent=1 // pred_region
      %35 = dma.done [#allocation6], 32
    $region13: #{tpu_custom_call.1} parent=1 // pred_fallthru
      _
    // Predicated region
    $region14: #{tpu_custom_call.1} parent=1 // pred_check
      _
    $region15: #{tpu_custom_call.1} parent=1 // pred_check_branch
      %37 = sbr.rel (0) target = $region17
    $region16: #{tpu_custom_call.1} parent=1 // pred_region
      %39 = dma.done [#allocation4], 128
    $region17: #{tpu_custom_call.1} parent=1 // pred_fallthru
      _
    %40 = sfence
    %v41 = vld [vmem:[#allocation7] sm:$0xf]
    %v42 = vld [vmem:[#allocation7 + $0x4] sm:$0xf]
    %43 = vst [vmem:[#allocation2] sm:$0xf] 0.0
    %44 = vst [vmem:[#allocation2 + $0x4] sm:$0xf] 0.0
    %vm45 = vcmask 125952
    %v46 = vsel %vm45, %v41, 0.0
    %v47 = vrot.slane %v46, 4
    %v48 = vadd.f32 %v46, %v47
    %v49 = vrot.slane %v48, 2
    %v50 = vadd.f32 %v48, %v49
    %v51 = vrot.slane %v50, 1
    %v52 = vadd.f32 %v50, %v51
    %v53 = vsel %vm45, %v42, 0.0
    %v54 = vrot.slane %v53, 4
    %v55 = vadd.f32 %v53, %v54
    %v56 = vrot.slane %v55, 2
    %v57 = vadd.f32 %v55, %v56
    %v58 = vrot.slane %v57, 1
    %v59 = vadd.f32 %v57, %v58
    %v60 = vrcp.pop 4.0
    %v61 = vmul.f32 4.0, %v60
    %v62 = vsub.f32 1.0, %v61
    %v63 = vmul.f32 %v60, %v62
    %v64 = vadd.f32 %v60, %v63
    %vm65 = vweird.f32 %v60
    %v66 = vsel %vm65, %v60, %v64
    %v67 = vmul.f32 %v52, %v66
    %v68 = vmul.f32 %v59, %v66
    %vm69 = vcmask 122880
    %70 = vst.msk [vmem:[#allocation2 + $0x2] sm:$0x1] %vm69, %v67
    %71 = vst.msk [vmem:[#allocation2 + $0x6] sm:$0x1] %vm69, %v68
    %v72 = vsel %vm45, %v41, -inf
    %v73 = vrot.slane %v72, 4
    %v74 = vmax.f32 %v72, %v73
    %v75 = vrot.slane %v74, 2
    %v76 = vmax.f32 %v74, %v75
    %v77 = vrot.slane %v76, 1
    %v78 = vmax.f32 %v76, %v77
    %v79 = vsel %vm45, %v42, -inf
    %v80 = vrot.slane %v79, 4
    %v81 = vmax.f32 %v79, %v80
    %v82 = vrot.slane %v81, 2
    %v83 = vmax.f32 %v81, %v82
    %v84 = vrot.slane %v83, 1
    %v85 = vmax.f32 %v83, %v84
    %86 = vst.msk [vmem:[#allocation2 + $0x3] sm:$0x1] %vm69, %v78
    %87 = vst.msk [vmem:[#allocation2 + $0x7] sm:$0x1] %vm69, %v85
    %v88 = vld [vmem:[#allocation2] sm:$0xf]
    %v89 = vld [vmem:[#allocation2 + $0x4] sm:$0xf]
    %v90 = vld [vmem:[#allocation2 + $0x2] sm:$0x3]
    %v91 = vld [vmem:[#allocation2 + $0x6] sm:$0x3]
    %s92 = sld [smem:[#allocation3]]
    %s93 = sld [smem:[#allocation3 + $0x1]]
    %s94 = sld [smem:[#allocation3 + $0x2]]
    %s95 = sld [smem:[#allocation3 + $0x80]]
    %s96 = sld [smem:[#allocation3 + $0x81]]
    %s97 = sld [smem:[#allocation3 + $0x82]]
    %v98 = vstv %s92
    %v99 = vmul.f32 %v98, %v88
    %v100 = vmul.f32 %v98, %v89
    %v101 = vstv %s93
    %v102 = vmul.f32 %v101, %v90
    %v103 = vmul.f32 %v101, %v91
    %106 = vrot.lane.b32.xlu0 %v102, 127
    %v107 = vpop.permute.xlu0 %106
    %108 = vrot.lane.b32.xlu0 %v103, 127
    %v109 = vpop.permute.xlu0 %108
    %v110 = vrot.slane %v107, 6
    %v111 = vrot.slane %v109, 6
    %vm112 = vcmask 1039360
    %v113 = vsel %vm112, %v110, %v107
    %v114 = vsel %vm112, %v111, %v109
    %v117 = vadd.f32 %v99, %v113
    %v118 = vadd.f32 %v100, %v114
    %v119 = vstv %s94
    %v120 = vmul.f32 %v119, %v90
    %v121 = vmul.f32 %v119, %v91
    %124 = vrot.lane.b32.xlu0 %v120, 126
    %v125 = vpop.permute.xlu0 %124
    %126 = vrot.lane.b32.xlu0 %v121, 126
    %v127 = vpop.permute.xlu0 %126
    %v128 = vrot.slane %v125, 6
    %v129 = vrot.slane %v127, 6
    %vm130 = vcmask 1031168
    %v131 = vsel %vm130, %v128, %v125
    %v132 = vsel %vm130, %v129, %v127
    %v135 = vadd.f32 %v117, %v131
    %v136 = vadd.f32 %v118, %v132
    %v137 = vstv %s95
    %v138 = vmul.f32 %v137, %v88
    %v139 = vmul.f32 %v137, %v89
    %v142 = vrot.slane %v138, 7
    %v143 = vrot.slane %v142, 2
    %v144 = vrot.slane %v139, 7
    %v145 = vrot.slane %v144, 2
    %v148 = vadd.f32 %v135, %v143
    %v149 = vadd.f32 %v136, %v145
    %v150 = vstv %s96
    %v151 = vmul.f32 %v150, %v90
    %v152 = vmul.f32 %v150, %v91
    %v155 = vrot.slane %v151, 7
    %v156 = vrot.slane %v155, 2
    %v157 = vrot.slane %v152, 7
    %v158 = vrot.slane %v157, 2
    %159 = vrot.lane.b32.xlu0 %v156, 127
    %v160 = vpop.permute.xlu0 %159
    %161 = vrot.lane.b32.xlu0 %v158, 127
    %v162 = vpop.permute.xlu0 %161
    %v163 = vrot.slane %v160, 6
    %v164 = vrot.slane %v162, 6
    %v165 = vsel %vm112, %v163, %v160
    %v166 = vsel %vm112, %v164, %v162
    %v169 = vadd.f32 %v148, %v165
    %v170 = vadd.f32 %v149, %v166
    %v171 = vstv %s97
    %v172 = vmul.f32 %v171, %v90
    %v173 = vmul.f32 %v171, %v91
    %v176 = vrot.slane %v172, 7
    %v177 = vrot.slane %v176, 2
    %v178 = vrot.slane %v173, 7
    %v179 = vrot.slane %v178, 2
    %180 = vrot.lane.b32.xlu0 %v177, 126
    %v181 = vpop.permute.xlu0 %180
    %182 = vrot.lane.b32.xlu0 %v179, 126
    %v183 = vpop.permute.xlu0 %182
    %v184 = vrot.slane %v181, 6
    %v185 = vrot.slane %v183, 6
    %v186 = vsel %vm130, %v184, %v181
    %v187 = vsel %vm130, %v185, %v183
    %v190 = vadd.f32 %v169, %v186
    %v191 = vadd.f32 %v170, %v187
    %v192 = vxor.u32 %v190, 2147483648
    %v193 = vxor.u32 %v191, 2147483648
    %v194 = vmul.f32 %v192, 1.442695
    %v195 = vpow.pop %v194
    %v196 = vmul.f32 %v193, 1.442695
    %v197 = vpow.pop %v196
    %v198 = vadd.f32 %v195, 1.0
    %v199 = vadd.f32 %v197, 1.0
    %v200 = vrcp.pop %v198
    %v201 = vmul.f32 %v198, %v200
    %v202 = vsub.f32 1.0, %v201
    %v203 = vmul.f32 %v200, %v202
    %v204 = vadd.f32 %v200, %v203
    %vm205 = vweird.f32 %v198
    %vm206 = vweird.f32 %v200
    %vm207 = vmor %vm205, %vm206
    %v208 = vsel %vm207, %v200, %v204
    %v209 = vand.u32 2147483647, %v198
    %vm210 = vcmp.eq.f32.partialorder %v209, 8.507059e+37
    %v211 = vand.u32 %v198, 2147483648
    %v212 = vor.u32 1.1754944e-38, %v211
    %v213 = vsel %vm210, %v212, %v208
    %v214 = vmul.f32 1.0, %v213
    %v215 = vrcp.pop %v199
    %v216 = vmul.f32 %v199, %v215
    %v217 = vsub.f32 1.0, %v216
    %v218 = vmul.f32 %v215, %v217
    %v219 = vadd.f32 %v215, %v218
    %vm220 = vweird.f32 %v199
    %vm221 = vweird.f32 %v215
    %vm222 = vmor %vm220, %vm221
    %v223 = vsel %vm222, %v215, %v219
    %v224 = vand.u32 2147483647, %v199
    %vm225 = vcmp.eq.f32.partialorder %v224, 8.507059e+37
    %v226 = vand.u32 %v199, 2147483648
    %v227 = vor.u32 1.1754944e-38, %v226
    %v228 = vsel %vm225, %v227, %v223
    %v229 = vmul.f32 1.0, %v228
    %v232 = vperm.slane %v214, 0
    %v233 = vperm.slane %v214, 2
    %v234 = vperm.slane %v229, 0
    %v235 = vperm.slane %v229, 2
    %v240 = vperm.slane %v232, 0
    %v241 = vperm.slane %v233, 0
    %v242 = vperm.slane %v234, 0
    %v243 = vperm.slane %v235, 0
    %246 = vrot.lane.b32.xlu0 %v41, 127
    %v247 = vpop.permute.xlu0 %246
    %248 = vrot.lane.b32.xlu0 %v42, 127
    %v249 = vpop.permute.xlu0 %248
    %v252 = vmul.f32 %v240, %v247
    %v253 = vmul.f32 %v241, %v247
    %v254 = vmul.f32 %v242, %v249
    %v255 = vmul.f32 %v243, %v249
    %260 = vrot.lane.b32.xlu0 %v252, 1
    %v261 = vpop.permute.xlu0 %260
    %262 = vrot.lane.b32.xlu0 %v253, 1
    %v263 = vpop.permute.xlu0 %262
    %264 = vrot.lane.b32.xlu0 %v254, 1
    %v265 = vpop.permute.xlu0 %264
    %266 = vrot.lane.b32.xlu0 %v255, 1
    %v267 = vpop.permute.xlu0 %266
    %vm268 = vcmask 7168
    %v269 = vsel %vm268, %v261, %v263
    %v270 = vsel %vm268, %v265, %v267
    %273 = vst.msk [vmem:[#allocation8] sm:$0xf] %vm45, %v269
    %274 = vst.msk [vmem:[#allocation8 + $0x4] sm:$0xf] %vm45, %v270
    // Predicated region
    $region18: #{tpu_custom_call.1} parent=1 // pred_check
      _
    $region19: #{tpu_custom_call.1} parent=1 // pred_check_branch
      %276 = sbr.rel (0) target = $region21
    $region20: #{tpu_custom_call.1} parent=1 // pred_region
      %278 = vsyncadd [#allocation5], 0
      %s279 = sshll.u32 [#allocation8], 4
      %s280 = int_to_ptr.vmem [resolvable:$true] %s279
      %s281 = sshll.u32 %s2, 4
      %s282 = int_to_ptr.hbm [resolvable:$true] %s281
      %287 = dma.vmem_to_hbm [thread:$0]  %s280, 128, %s282, [#allocation5], 64, 64, 4
    $region21: #{tpu_custom_call.1} parent=1 // pred_fallthru
      _
    // Predicated region
    $region22: #{tpu_custom_call.1} parent=1 // pred_check
      _
    $region23: #{tpu_custom_call.1} parent=1 // pred_check_branch
      %289 = sbr.rel (0) target = $region25
    $region24: #{tpu_custom_call.1} parent=1 // pred_region
      %291 = dma.done [#allocation5], 128
    $region25: #{tpu_custom_call.1} parent=1 // pred_fallthru
      _
    %292 = vsyncpa [#allocation4], 1
    %293 = vsyncpa [#allocation5], 1
    %294 = vsyncpa [#allocation6], 1

</llo_original>
